<compile_context>
chip_gen: v5e
topology: v5e:2x2
jax: 0.10.0
libtpu: 0.0.40
codegen_flags: <defaults>
</compile_context>

<pallas_src>
import jax
import jax.numpy as jnp
from jax.experimental import pallas as pl
from jax.experimental.pallas import tpu as pltpu


# ------------------------------ Pallas kernel --------------------------------

def _make_decoder_kernel(num_layers, batch, hidden_dim):
    L, B, H = num_layers, batch, hidden_dim

    def kernel(ids_ref, *refs):
        """Fused decoder: embedding gather + L LSTM layers + FC, per grid step.

        ids_ref  : SMEM (T*B,) int32 token ids (scalar prefetch)
        refs     : [emb(V,E),
                    (w_ih_t, w_hh_t, bias) x L,      # (in,4H),(H,4H),(1,4H)
                    wfc_t(H,V), bfc(1,V), h0(L,B,H), c0(L,B,H),   # inputs
                    pred(1,B,V), h_out(L,B,H), c_out(L,B,H),      # outputs
                    h_state(L,B,H), c_state(L,B,H)]               # VMEM scratch
        Gate column order is pre-permuted to [i, f, o, g].
        """
        emb_ref = refs[0]
        layer_refs = refs[1:1 + 3 * L]
        wfc_ref, bfc_ref, h0_ref, c0_ref = refs[1 + 3 * L:5 + 3 * L]
        pred_ref, h_out_ref, c_out_ref = refs[5 + 3 * L:8 + 3 * L]
        h_state, c_state = refs[8 + 3 * L:]

        t = pl.program_id(0)

        # Load the initial recurrent state into persistent VMEM scratch once.
        @pl.when(t == 0)
        def _load_state():
            h_state[...] = h0_ref[...]
            c_state[...] = c0_ref[...]

        # ---- embedding lookup: per-row gather driven by SMEM token ids -----
        rows = []
        for b in range(B):
            tok = ids_ref[t * B + b]                   # dynamic scalar (SMEM)
            rows.append(emb_ref[pl.ds(tok, 1), :])     # (1, E) row
        x = jnp.concatenate(rows, axis=0)              # (B, E)
        # TODO(synk): dropout(embedded) is identity here (eval mode).

        # ---- unrolled LSTM stack: two un-padded MXU dots per layer ----------
        for layer in range(L):
            w_ih_t = layer_refs[3 * layer]             # (in_dim, 4H)
            w_hh_t = layer_refs[3 * layer + 1]         # (H, 4H)
            b_gates = layer_refs[3 * layer + 2]        # (1, 4H)
            h_prev = h_state[layer]                    # (B, H)
            c_prev = c_state[layer]                    # (B, H)

            gates = (jnp.dot(x, w_ih_t[...],
                             preferred_element_type=jnp.float32)
                     + jnp.dot(h_prev, w_hh_t[...],
                               preferred_element_type=jnp.float32)
                     + b_gates[...])                   # (B, 4H), [i, f, o, g]

            ifo = jax.nn.sigmoid(gates[:, :3 * H])     # one sigmoid over 3H
            g_g = jnp.tanh(gates[:, 3 * H:])           # one tanh over H
            i_g = ifo[:, 0 * H:1 * H]
            f_g = ifo[:, 1 * H:2 * H]
            o_g = ifo[:, 2 * H:3 * H]

            c_new = f_g * c_prev + i_g * g_g
            h_new = o_g * jnp.tanh(c_new)

            h_state[layer] = h_new                     # state stays in VMEM
            c_state[layer] = c_new
            x = h_new                                  # input to next layer

        # ---- final FC on last layer's hidden state (lane-dense V) ----------
        pred_ref[0] = (jnp.dot(x, wfc_ref[...],
                               preferred_element_type=jnp.float32)
                       + bfc_ref[...])

        # Write the recurrent state back to HBM only after the last step.
        @pl.when(t == pl.num_programs(0) - 1)
        def _store_state():
            h_out_ref[...] = h_state[...]
            c_out_ref[...] = c_state[...]

    return kernel


# ------------------------------ wrappers --------------------------------------

def _const_spec(shape):
    """Full-array block whose index never changes -> DMA'd once, VMEM-resident."""
    n = len(shape)
    return pl.BlockSpec(shape, lambda *args, _n=n: (0,) * _n)


def decoder_run_fused(params, tokens, hidden, cell):
    """Run T fused decode steps (teacher-forced token sequence) in ONE kernel.

    tokens : (T, B) int32
    hidden, cell : (L, B, H) f32
    returns (predictions (T, B, V), hidden (L, B, H), cell (L, B, H))
    """
    T, B = tokens.shape
    L, _, H = hidden.shape
    V, E = params["embedding"].shape

    weight_inputs = [params["embedding"]]
    weight_specs = [_const_spec((V, E))]
    for (w_ih_t, w_hh_t, b_gates) in params["layers"]:
        weight_inputs += [w_ih_t, w_hh_t, b_gates]
        weight_specs += [_const_spec(tuple(w_ih_t.shape)),
                         _const_spec(tuple(w_hh_t.shape)),
                         _const_spec(tuple(b_gates.shape))]
    weight_inputs += [params["w_fc_t"], params["b_fc"]]
    weight_specs += [_const_spec((H, V)), _const_spec((1, V))]

    in_specs = weight_specs + [_const_spec((L, B, H)), _const_spec((L, B, H))]

    out_specs = (
        pl.BlockSpec((1, B, V), lambda t, ids: (t, 0, 0)),   # per-step logits
        _const_spec((L, B, H)),                              # final hidden
        _const_spec((L, B, H)),                              # final cell
    )
    out_shape = (
        jax.ShapeDtypeStruct((T, B, V), jnp.float32),
        jax.ShapeDtypeStruct((L, B, H), jnp.float32),
        jax.ShapeDtypeStruct((L, B, H), jnp.float32),
    )

    grid_spec = pltpu.PrefetchScalarGridSpec(
        num_scalar_prefetch=1,
        grid=(T,),
        in_specs=in_specs,
        out_specs=out_specs,
        scratch_shapes=[pltpu.VMEM((L, B, H), jnp.float32),   # h state
                        pltpu.VMEM((L, B, H), jnp.float32)],  # c state
    )

    kernel = _make_decoder_kernel(L, B, H)
    ids_flat = tokens.reshape(-1).astype(jnp.int32)

    return pl.pallas_call(
        kernel,
        grid_spec=grid_spec,
        out_shape=out_shape,
        compiler_params=pltpu.CompilerParams(
            dimension_semantics=("arbitrary",)),   # steps are sequential
    )(ids_flat, *weight_inputs, hidden, cell)


def decoder_forward(params, x, hidden, cell):
    """Mirrors Decoder.forward (eval mode): single step, x shape (B,)."""
    preds, h_new, c_new = decoder_run_fused(
        params, x.reshape(1, -1).astype(jnp.int32), hidden, cell)
    return preds[0], h_new, c_new


# ------------------------------ parameters ------------------------------------

def init_raw_params(output_dim, emb_dim, hidden_dim, num_layers, key):
    """PyTorch-layout parameters (for the reference and for prep)."""
    keys = jax.random.split(key, 3 + 4 * num_layers)
    k = iter(keys)
    embedding = jax.random.normal(next(k), (output_dim, emb_dim), jnp.float32)
    bound = 1.0 / (hidden_dim ** 0.5)
    lstm = []
    for layer in range(num_layers):
        in_dim = emb_dim if layer == 0 else hidden_dim
        w_ih = jax.random.uniform(next(k), (4 * hidden_dim, in_dim),
                                  jnp.float32, -bound, bound)
        w_hh = jax.random.uniform(next(k), (4 * hidden_dim, hidden_dim),
                                  jnp.float32, -bound, bound)
        b_ih = jax.random.uniform(next(k), (4 * hidden_dim,),
                                  jnp.float32, -bound, bound)
        b_hh = jax.random.uniform(next(k), (4 * hidden_dim,),
                                  jnp.float32, -bound, bound)
        lstm.append((w_ih, w_hh, b_ih, b_hh))
    fc_w = jax.random.uniform(next(k), (output_dim, hidden_dim),
                              jnp.float32, -bound, bound)
    fc_b = jax.random.uniform(next(k), (output_dim,),
                              jnp.float32, -bound, bound)
    return {"embedding": embedding, "lstm": lstm, "fc_w": fc_w, "fc_b": fc_b}


def prepare_kernel_params(raw):
    """Transpose weights and permute gate columns i,f,g,o -> i,f,o,g."""
    H = raw["lstm"][0][1].shape[1]
    perm = jnp.concatenate([jnp.arange(0, H),           # i
                            jnp.arange(H, 2 * H),       # f
                            jnp.arange(3 * H, 4 * H),   # o
                            jnp.arange(2 * H, 3 * H)])  # g
    layers = []
    for (w_ih, w_hh, b_ih, b_hh) in raw["lstm"]:
        layers.append((jnp.transpose(w_ih[perm, :]),            # (in, 4H)
                       jnp.transpose(w_hh[perm, :]),            # (H, 4H)
                       (b_ih + b_hh)[perm].reshape(1, 4 * H)))  # (1, 4H)
    return {
        "embedding": raw["embedding"],
        "layers": layers,
        "w_fc_t": jnp.transpose(raw["fc_w"]),                   # (H, V)
        "b_fc": raw["fc_b"].reshape(1, -1),                     # (1, V)
    }


# ------------------------------ pure-JAX reference ----------------------------

def reference_forward(raw, x, hidden, cell):
    """Single PyTorch-semantics decoder step (eval mode) in plain JAX."""
    H = hidden.shape[-1]
    hp = jax.lax.Precision.HIGHEST
    inp = raw["embedding"][x]                                   # (B, E)
    h_list, c_list = [], []
    for layer, (w_ih, w_hh, b_ih, b_hh) in enumerate(raw["lstm"]):
        gates = (jnp.dot(inp, w_ih.T, precision=hp)
                 + jnp.dot(hidden[layer], w_hh.T, precision=hp)
                 + b_ih + b_hh)
        i = jax.nn.sigmoid(gates[:, 0 * H:1 * H])
        f = jax.nn.sigmoid(gates[:, 1 * H:2 * H])
        g = jnp.tanh(gates[:, 2 * H:3 * H])
        o = jax.nn.sigmoid(gates[:, 3 * H:4 * H])
        c = f * cell[layer] + i * g
        h = o * jnp.tanh(c)
        h_list.append(h)
        c_list.append(c)
        inp = h
    pred = jnp.dot(inp, raw["fc_w"].T, precision=hp) + raw["fc_b"]
    return pred, jnp.stack(h_list), jnp.stack(c_list)


# --------------------------------- main ---------------------------------------

if __name__ == "__main__":
    OUTPUT_DIM = 128   # vocab; multiple of 128 -> lane-dense logits stores
    EMB_DIM = 32
    HIDDEN_DIM = 32
    NUM_LAYERS = 2
    BATCH = 8
    SEQ = 4            # decode steps fused into one pallas_call for the demo

    key = jax.random.PRNGKey(0)
    k_params, k_x, k_h, k_c = jax.random.split(key, 4)

    raw = init_raw_params(OUTPUT_DIM, EMB_DIM, HIDDEN_DIM, NUM_LAYERS, k_params)
    params = prepare_kernel_params(raw)

    hidden = jax.random.normal(k_h, (NUM_LAYERS, BATCH, HIDDEN_DIM), jnp.float32)
    cell = jax.random.normal(k_c, (NUM_LAYERS, BATCH, HIDDEN_DIM), jnp.float32)
    tokens = jax.random.randint(k_x, (SEQ, BATCH), 0, OUTPUT_DIM,
                                dtype=jnp.int32)

    TOL = 2e-2

    # ---- single step: exactly Decoder.forward semantics ---------------------
    step = jax.jit(decoder_forward)
    pred, h1, c1 = step(params, tokens[0], hidden, cell)
    jax.block_until_ready((pred, h1, c1))
    assert pred.shape == (BATCH, OUTPUT_DIM)
    assert h1.shape == (NUM_LAYERS, BATCH, HIDDEN_DIM)
    assert c1.shape == (NUM_LAYERS, BATCH, HIDDEN_DIM)

    pred_r, h_r, c_r = reference_forward(raw, tokens[0], hidden, cell)
    assert float(jnp.max(jnp.abs(pred - pred_r))) < TOL
    assert float(jnp.max(jnp.abs(h1 - h_r))) < TOL
    assert float(jnp.max(jnp.abs(c1 - c_r))) < TOL

    # ---- SEQ fused steps in ONE pallas_call (teacher-forced sequence) -------
    run = jax.jit(decoder_run_fused)
    preds_seq, h_T, c_T = run(params, tokens, hidden, cell)
    jax.block_until_ready((preds_seq, h_T, c_T))
    assert preds_seq.shape == (SEQ, BATCH, OUTPUT_DIM)

    h_cur, c_cur = hidden, cell
    for t in range(SEQ):
        p_cur, h_cur, c_cur = reference_forward(raw, tokens[t], h_cur, c_cur)
        assert float(jnp.max(jnp.abs(preds_seq[t] - p_cur))) < TOL
    assert float(jnp.max(jnp.abs(h_T - h_cur))) < TOL
    assert float(jnp.max(jnp.abs(c_T - c_cur))) < TOL

    print("KERNEL_OK")
</pallas_src>

<mosaic_0001>
module attributes {stable_mosaic.version = 11 : i64} {
  func.func @kernel(%arg0: i32, %arg1: memref<8xi32, #tpu.memory_space<smem>>, %arg2: memref<128x32xf32, #tpu.memory_space<vmem>>, %arg3: memref<32x128xf32, #tpu.memory_space<vmem>>, %arg4: memref<32x128xf32, #tpu.memory_space<vmem>>, %arg5: memref<1x128xf32, #tpu.memory_space<vmem>>, %arg6: memref<32x128xf32, #tpu.memory_space<vmem>>, %arg7: memref<32x128xf32, #tpu.memory_space<vmem>>, %arg8: memref<1x128xf32, #tpu.memory_space<vmem>>, %arg9: memref<32x128xf32, #tpu.memory_space<vmem>>, %arg10: memref<1x128xf32, #tpu.memory_space<vmem>>, %arg11: memref<2x8x32xf32, #tpu.memory_space<vmem>>, %arg12: memref<2x8x32xf32, #tpu.memory_space<vmem>>, %arg13: memref<1x8x128xf32, #tpu.memory_space<vmem>>, %arg14: memref<2x8x32xf32, #tpu.memory_space<vmem>>, %arg15: memref<2x8x32xf32, #tpu.memory_space<vmem>>, %arg16: memref<2x8x32xf32, #tpu.memory_space<vmem>>, %arg17: memref<2x8x32xf32, #tpu.memory_space<vmem>>) attributes {dimension_semantics = [#tpu.dimension_semantics<arbitrary>], iteration_bounds = array<i64: 1>, scalar_prefetch = 1 : i64, scratch_operands = 2 : i64, tpu.core_type = #tpu.core_type<tc>, window_params = [{pipeline_mode = #tpu.pipeline_mode<synchronous>, transform_indices = @transform_0, window_bounds = array<i64: 128, 32>}, {pipeline_mode = #tpu.pipeline_mode<synchronous>, transform_indices = @transform_1, window_bounds = array<i64: 32, 128>}, {pipeline_mode = #tpu.pipeline_mode<synchronous>, transform_indices = @transform_2, window_bounds = array<i64: 32, 128>}, {pipeline_mode = #tpu.pipeline_mode<synchronous>, transform_indices = @transform_3, window_bounds = array<i64: 1, 128>}, {pipeline_mode = #tpu.pipeline_mode<synchronous>, transform_indices = @transform_4, window_bounds = array<i64: 32, 128>}, {pipeline_mode = #tpu.pipeline_mode<synchronous>, transform_indices = @transform_5, window_bounds = array<i64: 32, 128>}, {pipeline_mode = #tpu.pipeline_mode<synchronous>, transform_indices = @transform_6, window_bounds = array<i64: 1, 128>}, {pipeline_mode = #tpu.pipeline_mode<synchronous>, transform_indices = @transform_7, window_bounds = array<i64: 32, 128>}, {pipeline_mode = #tpu.pipeline_mode<synchronous>, transform_indices = @transform_8, window_bounds = array<i64: 1, 128>}, {pipeline_mode = #tpu.pipeline_mode<synchronous>, transform_indices = @transform_9, window_bounds = array<i64: 2, 8, 32>}, {pipeline_mode = #tpu.pipeline_mode<synchronous>, transform_indices = @transform_10, window_bounds = array<i64: 2, 8, 32>}, {transform_indices = @transform_11, window_bounds = array<i64: 1, 8, 128>}, {pipeline_mode = #tpu.pipeline_mode<synchronous>, transform_indices = @transform_12, window_bounds = array<i64: 2, 8, 32>}, {pipeline_mode = #tpu.pipeline_mode<synchronous>, transform_indices = @transform_13, window_bounds = array<i64: 2, 8, 32>}]} {
    %c0_i32 = arith.constant 0 : i32
    %0 = arith.cmpi eq, %arg0, %c0_i32 : i32
    %1 = arith.extui %0 : i1 to i32
    %c0_i32_0 = arith.constant 0 : i32
    %2 = arith.cmpi ne, %1, %c0_i32_0 : i32
    scf.if %2 {
      %c0_66 = arith.constant 0 : index
      %c0_67 = arith.constant 0 : index
      %c0_68 = arith.constant 0 : index
      %131 = vector.load %arg11[%c0_66, %c0_67, %c0_68] : memref<2x8x32xf32, #tpu.memory_space<vmem>>, vector<2x8x32xf32>
      %c0_69 = arith.constant 0 : index
      %c0_70 = arith.constant 0 : index
      %c0_71 = arith.constant 0 : index
      %132 = vector.load %arg16[%c0_69, %c0_70, %c0_71] : memref<2x8x32xf32, #tpu.memory_space<vmem>>, vector<2x8x32xf32>
      tpu.vector_store %arg16[%c0_69, %c0_70, %c0_71], %131 {strides = array<i32>} : memref<2x8x32xf32, #tpu.memory_space<vmem>>, vector<2x8x32xf32>,
      %c0_72 = arith.constant 0 : index
      %c0_73 = arith.constant 0 : index
      %c0_74 = arith.constant 0 : index
      %133 = vector.load %arg12[%c0_72, %c0_73, %c0_74] : memref<2x8x32xf32, #tpu.memory_space<vmem>>, vector<2x8x32xf32>
      %c0_75 = arith.constant 0 : index
      %c0_76 = arith.constant 0 : index
      %c0_77 = arith.constant 0 : index
      %134 = vector.load %arg17[%c0_75, %c0_76, %c0_77] : memref<2x8x32xf32, #tpu.memory_space<vmem>>, vector<2x8x32xf32>
      tpu.vector_store %arg17[%c0_75, %c0_76, %c0_77], %133 {strides = array<i32>} : memref<2x8x32xf32, #tpu.memory_space<vmem>>, vector<2x8x32xf32>,
    } else {
    }
    %c8_i32 = arith.constant 8 : i32
    %3 = arith.muli %arg0, %c8_i32 : i32
    %c0_i32_1 = arith.constant 0 : i32
    %4 = arith.addi %3, %c0_i32_1 : i32
    %5 = arith.index_cast %4 : i32 to index
    %6 = memref.load %arg1[%5] : memref<8xi32, #tpu.memory_space<smem>>
    %7 = arith.index_cast %6 : i32 to index
    %c0 = arith.constant 0 : index
    %8 = vector.load %arg2[%7, %c0] : memref<128x32xf32, #tpu.memory_space<vmem>>, vector<1x32xf32>
    %c8_i32_2 = arith.constant 8 : i32
    %9 = arith.muli %arg0, %c8_i32_2 : i32
    %c1_i32 = arith.constant 1 : i32
    %10 = arith.addi %9, %c1_i32 : i32
    %11 = arith.index_cast %10 : i32 to index
    %12 = memref.load %arg1[%11] : memref<8xi32, #tpu.memory_space<smem>>
    %13 = arith.index_cast %12 : i32 to index
    %c0_3 = arith.constant 0 : index
    %14 = vector.load %arg2[%13, %c0_3] : memref<128x32xf32, #tpu.memory_space<vmem>>, vector<1x32xf32>
    %c8_i32_4 = arith.constant 8 : i32
    %15 = arith.muli %arg0, %c8_i32_4 : i32
    %c2_i32 = arith.constant 2 : i32
    %16 = arith.addi %15, %c2_i32 : i32
    %17 = arith.index_cast %16 : i32 to index
    %18 = memref.load %arg1[%17] : memref<8xi32, #tpu.memory_space<smem>>
    %19 = arith.index_cast %18 : i32 to index
    %c0_5 = arith.constant 0 : index
    %20 = vector.load %arg2[%19, %c0_5] : memref<128x32xf32, #tpu.memory_space<vmem>>, vector<1x32xf32>
    %c8_i32_6 = arith.constant 8 : i32
    %21 = arith.muli %arg0, %c8_i32_6 : i32
    %c3_i32 = arith.constant 3 : i32
    %22 = arith.addi %21, %c3_i32 : i32
    %23 = arith.index_cast %22 : i32 to index
    %24 = memref.load %arg1[%23] : memref<8xi32, #tpu.memory_space<smem>>
    %25 = arith.index_cast %24 : i32 to index
    %c0_7 = arith.constant 0 : index
    %26 = vector.load %arg2[%25, %c0_7] : memref<128x32xf32, #tpu.memory_space<vmem>>, vector<1x32xf32>
    %c8_i32_8 = arith.constant 8 : i32
    %27 = arith.muli %arg0, %c8_i32_8 : i32
    %c4_i32 = arith.constant 4 : i32
    %28 = arith.addi %27, %c4_i32 : i32
    %29 = arith.index_cast %28 : i32 to index
    %30 = memref.load %arg1[%29] : memref<8xi32, #tpu.memory_space<smem>>
    %31 = arith.index_cast %30 : i32 to index
    %c0_9 = arith.constant 0 : index
    %32 = vector.load %arg2[%31, %c0_9] : memref<128x32xf32, #tpu.memory_space<vmem>>, vector<1x32xf32>
    %c8_i32_10 = arith.constant 8 : i32
    %33 = arith.muli %arg0, %c8_i32_10 : i32
    %c5_i32 = arith.constant 5 : i32
    %34 = arith.addi %33, %c5_i32 : i32
    %35 = arith.index_cast %34 : i32 to index
    %36 = memref.load %arg1[%35] : memref<8xi32, #tpu.memory_space<smem>>
    %37 = arith.index_cast %36 : i32 to index
    %c0_11 = arith.constant 0 : index
    %38 = vector.load %arg2[%37, %c0_11] : memref<128x32xf32, #tpu.memory_space<vmem>>, vector<1x32xf32>
    %c8_i32_12 = arith.constant 8 : i32
    %39 = arith.muli %arg0, %c8_i32_12 : i32
    %c6_i32 = arith.constant 6 : i32
    %40 = arith.addi %39, %c6_i32 : i32
    %41 = arith.index_cast %40 : i32 to index
    %42 = memref.load %arg1[%41] : memref<8xi32, #tpu.memory_space<smem>>
    %43 = arith.index_cast %42 : i32 to index
    %c0_13 = arith.constant 0 : index
    %44 = vector.load %arg2[%43, %c0_13] : memref<128x32xf32, #tpu.memory_space<vmem>>, vector<1x32xf32>
    %c8_i32_14 = arith.constant 8 : i32
    %45 = arith.muli %arg0, %c8_i32_14 : i32
    %c7_i32 = arith.constant 7 : i32
    %46 = arith.addi %45, %c7_i32 : i32
    %47 = arith.index_cast %46 : i32 to index
    %48 = memref.load %arg1[%47] : memref<8xi32, #tpu.memory_space<smem>>
    %49 = arith.index_cast %48 : i32 to index
    %c0_15 = arith.constant 0 : index
    %50 = vector.load %arg2[%49, %c0_15] : memref<128x32xf32, #tpu.memory_space<vmem>>, vector<1x32xf32>
    %51 = tpu.concatenate %8, %14, %20, %26, %32, %38, %44, %50 in 0 : vector<1x32xf32>, vector<1x32xf32>, vector<1x32xf32>, vector<1x32xf32>, vector<1x32xf32>, vector<1x32xf32>, vector<1x32xf32>, vector<1x32xf32> -> vector<8x32xf32>
    %c0_16 = arith.constant 0 : index
    %c0_17 = arith.constant 0 : index
    %c0_18 = arith.constant 0 : index
    %52 = vector.load %arg16[%c0_16, %c0_17, %c0_18] : memref<2x8x32xf32, #tpu.memory_space<vmem>>, vector<1x8x32xf32>
    %53 = vector.shape_cast %52 : vector<1x8x32xf32> to vector<8x32xf32>
    %c0_19 = arith.constant 0 : index
    %c0_20 = arith.constant 0 : index
    %c0_21 = arith.constant 0 : index
    %54 = vector.load %arg17[%c0_19, %c0_20, %c0_21] : memref<2x8x32xf32, #tpu.memory_space<vmem>>, vector<1x8x32xf32>
    %55 = vector.shape_cast %54 : vector<1x8x32xf32> to vector<8x32xf32>
    %c0_22 = arith.constant 0 : index
    %c0_23 = arith.constant 0 : index
    %56 = vector.load %arg3[%c0_22, %c0_23] : memref<32x128xf32, #tpu.memory_space<vmem>>, vector<32x128xf32>
    %cst = arith.constant dense<0.000000e+00> : vector<8x128xf32>
    %57 = tpu.matmul %51, %56, %cst {dimension_numbers = #tpu.dot_dimension_numbers<[1], [0], [0], [1], [0, 0, 1, 1], [], []>} : vector<8x32xf32>, vector<32x128xf32>, vector<8x128xf32> -> vector<8x128xf32>
    %c0_24 = arith.constant 0 : index
    %c0_25 = arith.constant 0 : index
    %58 = vector.load %arg4[%c0_24, %c0_25] : memref<32x128xf32, #tpu.memory_space<vmem>>, vector<32x128xf32>
    %cst_26 = arith.constant dense<0.000000e+00> : vector<8x128xf32>
    %59 = tpu.matmul %53, %58, %cst_26 {dimension_numbers = #tpu.dot_dimension_numbers<[1], [0], [0], [1], [0, 0, 1, 1], [], []>} : vector<8x32xf32>, vector<32x128xf32>, vector<8x128xf32> -> vector<8x128xf32>
    %60 = arith.addf %57, %59 : vector<8x128xf32>
    %c0_27 = arith.constant 0 : index
    %c0_28 = arith.constant 0 : index
    %61 = vector.load %arg5[%c0_27, %c0_28] : memref<1x128xf32, #tpu.memory_space<vmem>>, vector<1x128xf32>
    %62 = vector.broadcast %61 : vector<1x128xf32> to vector<8x128xf32>
    %63 = arith.addf %60, %62 : vector<8x128xf32>
    %64 = vector.extract_strided_slice %63 {offsets = [0, 0], sizes = [8, 96], strides = [1, 1]} : vector<8x128xf32> to vector<8x96xf32>
    %65 = arith.negf %64 : vector<8x96xf32>
    %66 = math.exp %65 : vector<8x96xf32>
    %cst_29 = arith.constant 1.000000e+00 : f32
    %67 = vector.broadcast %cst_29 : f32 to vector<8x96xf32>
    %68 = arith.addf %67, %66 : vector<8x96xf32>
    %69 = arith.divf %67, %68 : vector<8x96xf32>
    %70 = vector.extract_strided_slice %63 {offsets = [0, 96], sizes = [8, 32], strides = [1, 1]} : vector<8x128xf32> to vector<8x32xf32>
    %71 = math.tanh %70 : vector<8x32xf32>
    %72 = vector.extract_strided_slice %69 {offsets = [0, 0], sizes = [8, 32], strides = [1, 1]} : vector<8x96xf32> to vector<8x32xf32>
    %73 = vector.extract_strided_slice %69 {offsets = [0, 32], sizes = [8, 32], strides = [1, 1]} : vector<8x96xf32> to vector<8x32xf32>
    %74 = vector.extract_strided_slice %69 {offsets = [0, 64], sizes = [8, 32], strides = [1, 1]} : vector<8x96xf32> to vector<8x32xf32>
    %75 = arith.mulf %73, %55 : vector<8x32xf32>
    %76 = arith.mulf %72, %71 : vector<8x32xf32>
    %77 = arith.addf %75, %76 : vector<8x32xf32>
    %78 = math.tanh %77 : vector<8x32xf32>
    %79 = arith.mulf %74, %78 : vector<8x32xf32>
    %c0_30 = arith.constant 0 : index
    %c0_31 = arith.constant 0 : index
    %c0_32 = arith.constant 0 : index
    %80 = vector.load %arg16[%c0_30, %c0_31, %c0_32] : memref<2x8x32xf32, #tpu.memory_space<vmem>>, vector<1x8x32xf32>
    %81 = vector.shape_cast %80 : vector<1x8x32xf32> to vector<8x32xf32>
    %82 = vector.shape_cast %79 : vector<8x32xf32> to vector<1x8x32xf32>
    tpu.vector_store %arg16[%c0_30, %c0_31, %c0_32], %82 {strides = array<i32>} : memref<2x8x32xf32, #tpu.memory_space<vmem>>, vector<1x8x32xf32>,
    %c0_33 = arith.constant 0 : index
    %c0_34 = arith.constant 0 : index
    %c0_35 = arith.constant 0 : index
    %83 = vector.load %arg17[%c0_33, %c0_34, %c0_35] : memref<2x8x32xf32, #tpu.memory_space<vmem>>, vector<1x8x32xf32>
    %84 = vector.shape_cast %83 : vector<1x8x32xf32> to vector<8x32xf32>
    %85 = vector.shape_cast %77 : vector<8x32xf32> to vector<1x8x32xf32>
    tpu.vector_store %arg17[%c0_33, %c0_34, %c0_35], %85 {strides = array<i32>} : memref<2x8x32xf32, #tpu.memory_space<vmem>>, vector<1x8x32xf32>,
    %c1 = arith.constant 1 : index
    %c0_36 = arith.constant 0 : index
    %c0_37 = arith.constant 0 : index
    %86 = vector.load %arg16[%c1, %c0_36, %c0_37] : memref<2x8x32xf32, #tpu.memory_space<vmem>>, vector<1x8x32xf32>
    %87 = vector.shape_cast %86 : vector<1x8x32xf32> to vector<8x32xf32>
    %c1_38 = arith.constant 1 : index
    %c0_39 = arith.constant 0 : index
    %c0_40 = arith.constant 0 : index
    %88 = vector.load %arg17[%c1_38, %c0_39, %c0_40] : memref<2x8x32xf32, #tpu.memory_space<vmem>>, vector<1x8x32xf32>
    %89 = vector.shape_cast %88 : vector<1x8x32xf32> to vector<8x32xf32>
    %c0_41 = arith.constant 0 : index
    %c0_42 = arith.constant 0 : index
    %90 = vector.load %arg6[%c0_41, %c0_42] : memref<32x128xf32, #tpu.memory_space<vmem>>, vector<32x128xf32>
    %cst_43 = arith.constant dense<0.000000e+00> : vector<8x128xf32>
    %91 = tpu.matmul %79, %90, %cst_43 {dimension_numbers = #tpu.dot_dimension_numbers<[1], [0], [0], [1], [0, 0, 1, 1], [], []>} : vector<8x32xf32>, vector<32x128xf32>, vector<8x128xf32> -> vector<8x128xf32>
    %c0_44 = arith.constant 0 : index
    %c0_45 = arith.constant 0 : index
    %92 = vector.load %arg7[%c0_44, %c0_45] : memref<32x128xf32, #tpu.memory_space<vmem>>, vector<32x128xf32>
    %cst_46 = arith.constant dense<0.000000e+00> : vector<8x128xf32>
    %93 = tpu.matmul %87, %92, %cst_46 {dimension_numbers = #tpu.dot_dimension_numbers<[1], [0], [0], [1], [0, 0, 1, 1], [], []>} : vector<8x32xf32>, vector<32x128xf32>, vector<8x128xf32> -> vector<8x128xf32>
    %94 = arith.addf %91, %93 : vector<8x128xf32>
    %c0_47 = arith.constant 0 : index
    %c0_48 = arith.constant 0 : index
    %95 = vector.load %arg8[%c0_47, %c0_48] : memref<1x128xf32, #tpu.memory_space<vmem>>, vector<1x128xf32>
    %96 = vector.broadcast %95 : vector<1x128xf32> to vector<8x128xf32>
    %97 = arith.addf %94, %96 : vector<8x128xf32>
    %98 = vector.extract_strided_slice %97 {offsets = [0, 0], sizes = [8, 96], strides = [1, 1]} : vector<8x128xf32> to vector<8x96xf32>
    %99 = arith.negf %98 : vector<8x96xf32>
    %100 = math.exp %99 : vector<8x96xf32>
    %cst_49 = arith.constant 1.000000e+00 : f32
    %101 = vector.broadcast %cst_49 : f32 to vector<8x96xf32>
    %102 = arith.addf %101, %100 : vector<8x96xf32>
    %103 = arith.divf %101, %102 : vector<8x96xf32>
    %104 = vector.extract_strided_slice %97 {offsets = [0, 96], sizes = [8, 32], strides = [1, 1]} : vector<8x128xf32> to vector<8x32xf32>
    %105 = math.tanh %104 : vector<8x32xf32>
    %106 = vector.extract_strided_slice %103 {offsets = [0, 0], sizes = [8, 32], strides = [1, 1]} : vector<8x96xf32> to vector<8x32xf32>
    %107 = vector.extract_strided_slice %103 {offsets = [0, 32], sizes = [8, 32], strides = [1, 1]} : vector<8x96xf32> to vector<8x32xf32>
    %108 = vector.extract_strided_slice %103 {offsets = [0, 64], sizes = [8, 32], strides = [1, 1]} : vector<8x96xf32> to vector<8x32xf32>
    %109 = arith.mulf %107, %89 : vector<8x32xf32>
    %110 = arith.mulf %106, %105 : vector<8x32xf32>
    %111 = arith.addf %109, %110 : vector<8x32xf32>
    %112 = math.tanh %111 : vector<8x32xf32>
    %113 = arith.mulf %108, %112 : vector<8x32xf32>
    %c1_50 = arith.constant 1 : index
    %c0_51 = arith.constant 0 : index
    %c0_52 = arith.constant 0 : index
    %114 = vector.load %arg16[%c1_50, %c0_51, %c0_52] : memref<2x8x32xf32, #tpu.memory_space<vmem>>, vector<1x8x32xf32>
    %115 = vector.shape_cast %114 : vector<1x8x32xf32> to vector<8x32xf32>
    %116 = vector.shape_cast %113 : vector<8x32xf32> to vector<1x8x32xf32>
    tpu.vector_store %arg16[%c1_50, %c0_51, %c0_52], %116 {strides = array<i32>} : memref<2x8x32xf32, #tpu.memory_space<vmem>>, vector<1x8x32xf32>,
    %c1_53 = arith.constant 1 : index
    %c0_54 = arith.constant 0 : index
    %c0_55 = arith.constant 0 : index
    %117 = vector.load %arg17[%c1_53, %c0_54, %c0_55] : memref<2x8x32xf32, #tpu.memory_space<vmem>>, vector<1x8x32xf32>
    %118 = vector.shape_cast %117 : vector<1x8x32xf32> to vector<8x32xf32>
    %119 = vector.shape_cast %111 : vector<8x32xf32> to vector<1x8x32xf32>
    tpu.vector_store %arg17[%c1_53, %c0_54, %c0_55], %119 {strides = array<i32>} : memref<2x8x32xf32, #tpu.memory_space<vmem>>, vector<1x8x32xf32>,
    %c0_56 = arith.constant 0 : index
    %c0_57 = arith.constant 0 : index
    %120 = vector.load %arg9[%c0_56, %c0_57] : memref<32x128xf32, #tpu.memory_space<vmem>>, vector<32x128xf32>
    %cst_58 = arith.constant dense<0.000000e+00> : vector<8x128xf32>
    %121 = tpu.matmul %113, %120, %cst_58 {dimension_numbers = #tpu.dot_dimension_numbers<[1], [0], [0], [1], [0, 0, 1, 1], [], []>} : vector<8x32xf32>, vector<32x128xf32>, vector<8x128xf32> -> vector<8x128xf32>
    %c0_59 = arith.constant 0 : index
    %c0_60 = arith.constant 0 : index
    %122 = vector.load %arg10[%c0_59, %c0_60] : memref<1x128xf32, #tpu.memory_space<vmem>>, vector<1x128xf32>
    %123 = vector.broadcast %122 : vector<1x128xf32> to vector<8x128xf32>
    %124 = arith.addf %121, %123 : vector<8x128xf32>
    %c0_61 = arith.constant 0 : index
    %c0_62 = arith.constant 0 : index
    %c0_63 = arith.constant 0 : index
    %125 = vector.load %arg13[%c0_61, %c0_62, %c0_63] : memref<1x8x128xf32, #tpu.memory_space<vmem>>, vector<1x8x128xf32>
    %126 = vector.shape_cast %125 : vector<1x8x128xf32> to vector<8x128xf32>
    %127 = vector.shape_cast %124 : vector<8x128xf32> to vector<1x8x128xf32>
    tpu.vector_store %arg13[%c0_61, %c0_62, %c0_63], %127 {strides = array<i32>} : memref<1x8x128xf32, #tpu.memory_space<vmem>>, vector<1x8x128xf32>,
    %c0_i32_64 = arith.constant 0 : i32
    %128 = arith.cmpi eq, %arg0, %c0_i32_64 : i32
    %129 = arith.extui %128 : i1 to i32
    %c0_i32_65 = arith.constant 0 : i32
    %130 = arith.cmpi ne, %129, %c0_i32_65 : i32
    scf.if %130 {
      %c0_66 = arith.constant 0 : index
      %c0_67 = arith.constant 0 : index
      %c0_68 = arith.constant 0 : index
      %131 = vector.load %arg16[%c0_66, %c0_67, %c0_68] : memref<2x8x32xf32, #tpu.memory_space<vmem>>, vector<2x8x32xf32>
      %c0_69 = arith.constant 0 : index
      %c0_70 = arith.constant 0 : index
      %c0_71 = arith.constant 0 : index
      %132 = vector.load %arg14[%c0_69, %c0_70, %c0_71] : memref<2x8x32xf32, #tpu.memory_space<vmem>>, vector<2x8x32xf32>
      tpu.vector_store %arg14[%c0_69, %c0_70, %c0_71], %131 {strides = array<i32>} : memref<2x8x32xf32, #tpu.memory_space<vmem>>, vector<2x8x32xf32>,
      %c0_72 = arith.constant 0 : index
      %c0_73 = arith.constant 0 : index
      %c0_74 = arith.constant 0 : index
      %133 = vector.load %arg17[%c0_72, %c0_73, %c0_74] : memref<2x8x32xf32, #tpu.memory_space<vmem>>, vector<2x8x32xf32>
      %c0_75 = arith.constant 0 : index
      %c0_76 = arith.constant 0 : index
      %c0_77 = arith.constant 0 : index
      %134 = vector.load %arg15[%c0_75, %c0_76, %c0_77] : memref<2x8x32xf32, #tpu.memory_space<vmem>>, vector<2x8x32xf32>
      tpu.vector_store %arg15[%c0_75, %c0_76, %c0_77], %133 {strides = array<i32>} : memref<2x8x32xf32, #tpu.memory_space<vmem>>, vector<2x8x32xf32>,
    } else {
    }
    return
  }
  func.func @transform_0(%arg0: i32, %arg1: memref<8xi32, #tpu.memory_space<smem>>) -> (i32, i32) {
    %c0_i32 = arith.constant 0 : i32
    %c0_i32_0 = arith.constant 0 : i32
    %c0_i32_1 = arith.constant 0 : i32
    return %c0_i32, %c0_i32_0 : i32, i32
  }
  func.func @transform_1(%arg0: i32, %arg1: memref<8xi32, #tpu.memory_space<smem>>) -> (i32, i32) {
    %c0_i32 = arith.constant 0 : i32
    %c0_i32_0 = arith.constant 0 : i32
    %c0_i32_1 = arith.constant 0 : i32
    return %c0_i32, %c0_i32_0 : i32, i32
  }
  func.func @transform_2(%arg0: i32, %arg1: memref<8xi32, #tpu.memory_space<smem>>) -> (i32, i32) {
    %c0_i32 = arith.constant 0 : i32
    %c0_i32_0 = arith.constant 0 : i32
    %c0_i32_1 = arith.constant 0 : i32
    return %c0_i32, %c0_i32_0 : i32, i32
  }
  func.func @transform_3(%arg0: i32, %arg1: memref<8xi32, #tpu.memory_space<smem>>) -> (i32, i32) {
    %c0_i32 = arith.constant 0 : i32
    %c0_i32_0 = arith.constant 0 : i32
    %c0_i32_1 = arith.constant 0 : i32
    return %c0_i32, %c0_i32_0 : i32, i32
  }
  func.func @transform_4(%arg0: i32, %arg1: memref<8xi32, #tpu.memory_space<smem>>) -> (i32, i32) {
    %c0_i32 = arith.constant 0 : i32
    %c0_i32_0 = arith.constant 0 : i32
    %c0_i32_1 = arith.constant 0 : i32
    return %c0_i32, %c0_i32_0 : i32, i32
  }
  func.func @transform_5(%arg0: i32, %arg1: memref<8xi32, #tpu.memory_space<smem>>) -> (i32, i32) {
    %c0_i32 = arith.constant 0 : i32
    %c0_i32_0 = arith.constant 0 : i32
    %c0_i32_1 = arith.constant 0 : i32
    return %c0_i32, %c0_i32_0 : i32, i32
  }
  func.func @transform_6(%arg0: i32, %arg1: memref<8xi32, #tpu.memory_space<smem>>) -> (i32, i32) {
    %c0_i32 = arith.constant 0 : i32
    %c0_i32_0 = arith.constant 0 : i32
    %c0_i32_1 = arith.constant 0 : i32
    return %c0_i32, %c0_i32_0 : i32, i32
  }
  func.func @transform_7(%arg0: i32, %arg1: memref<8xi32, #tpu.memory_space<smem>>) -> (i32, i32) {
    %c0_i32 = arith.constant 0 : i32
    %c0_i32_0 = arith.constant 0 : i32
    %c0_i32_1 = arith.constant 0 : i32
    return %c0_i32, %c0_i32_0 : i32, i32
  }
  func.func @transform_8(%arg0: i32, %arg1: memref<8xi32, #tpu.memory_space<smem>>) -> (i32, i32) {
    %c0_i32 = arith.constant 0 : i32
    %c0_i32_0 = arith.constant 0 : i32
    %c0_i32_1 = arith.constant 0 : i32
    return %c0_i32, %c0_i32_0 : i32, i32
  }
  func.func @transform_9(%arg0: i32, %arg1: memref<8xi32, #tpu.memory_space<smem>>) -> (i32, i32, i32) {
    %c0_i32 = arith.constant 0 : i32
    %c0_i32_0 = arith.constant 0 : i32
    %c0_i32_1 = arith.constant 0 : i32
    %c0_i32_2 = arith.constant 0 : i32
    return %c0_i32, %c0_i32_0, %c0_i32_1 : i32, i32, i32
  }
  func.func @transform_10(%arg0: i32, %arg1: memref<8xi32, #tpu.memory_space<smem>>) -> (i32, i32, i32) {
    %c0_i32 = arith.constant 0 : i32
    %c0_i32_0 = arith.constant 0 : i32
    %c0_i32_1 = arith.constant 0 : i32
    %c0_i32_2 = arith.constant 0 : i32
    return %c0_i32, %c0_i32_0, %c0_i32_1 : i32, i32, i32
  }
  func.func @transform_11(%arg0: i32, %arg1: memref<8xi32, #tpu.memory_space<smem>>) -> (i32, i32, i32) {
    %c0_i32 = arith.constant 0 : i32
    %c0_i32_0 = arith.constant 0 : i32
    %c0_i32_1 = arith.constant 0 : i32
    return %arg0, %c0_i32, %c0_i32_0 : i32, i32, i32
  }
  func.func @transform_12(%arg0: i32, %arg1: memref<8xi32, #tpu.memory_space<smem>>) -> (i32, i32, i32) {
    %c0_i32 = arith.constant 0 : i32
    %c0_i32_0 = arith.constant 0 : i32
    %c0_i32_1 = arith.constant 0 : i32
    %c0_i32_2 = arith.constant 0 : i32
    return %c0_i32, %c0_i32_0, %c0_i32_1 : i32, i32, i32
  }
  func.func @transform_13(%arg0: i32, %arg1: memref<8xi32, #tpu.memory_space<smem>>) -> (i32, i32, i32) {
    %c0_i32 = arith.constant 0 : i32
    %c0_i32_0 = arith.constant 0 : i32
    %c0_i32_1 = arith.constant 0 : i32
    %c0_i32_2 = arith.constant 0 : i32
    return %c0_i32, %c0_i32_0, %c0_i32_1 : i32, i32, i32
  }
}

</mosaic_0001>

<llo_original>
// kernel: decoder_forward.1
$region0: #{decoder_forward.1}
  #allocation0 [shape = 'u32[]', space=smem, size = 0x4, offset = 0x4, fixed_abs, tag = 'smem constant byte address 0x4 - core index']
  #allocation1 [shape = 'u32[72,128]{1,0:T(1,128)}', space=vmem, size = 0x9000, scoped, tag = 'internal scratch']
  #allocation2 [shape = 'f32[2,8,32]{2,1,0:T(8,128)}', space=vmem, size = 0x2000, scoped, tag = 'scratch operand']
  #allocation3 [shape = 'f32[2,8,32]{2,1,0:T(8,128)}', space=vmem, size = 0x2000, scoped, tag = 'scratch operand']
  #allocation4 [shape = 's32[1]{0}', space=sflag, size = 0x4, scoped, tag = 'scoped memory for decoder_forward.1']
  #allocation5 [shape = 'u8[512]{0}', space=smem, size = 0x200, scoped, tag = 'prefetched SMEM operand 0']
  %s0 = inlined_call_operand.vmem [shape: s32[8], index: 0, kind: input, shape index: {}]
  %s1 = inlined_call_operand.vmem [shape: f32[128,32], index: 1, kind: input, shape index: {}]
  %s2 = inlined_call_operand.vmem [shape: f32[32,128], index: 2, kind: input, shape index: {}]
  %s3 = inlined_call_operand.vmem [shape: f32[32,128], index: 3, kind: input, shape index: {}]
  %s4 = inlined_call_operand.vmem [shape: f32[1,128], index: 4, kind: input, shape index: {}]
  %s5 = inlined_call_operand.vmem [shape: f32[32,128], index: 5, kind: input, shape index: {}]
  %s6 = inlined_call_operand.vmem [shape: f32[32,128], index: 6, kind: input, shape index: {}]
  %s7 = inlined_call_operand.vmem [shape: f32[1,128], index: 7, kind: input, shape index: {}]
  %s8 = inlined_call_operand.vmem [shape: f32[32,128], index: 8, kind: input, shape index: {}]
  %s9 = inlined_call_operand.hbm [shape: f32[1,128], index: 9, kind: input, shape index: {}]
  %s10 = inlined_call_operand.hbm [shape: f32[2,8,32], index: 10, kind: input, shape index: {}]
  %s11 = inlined_call_operand.hbm [shape: f32[2,8,32], index: 11, kind: input, shape index: {}]
  %s12 = inlined_call_operand.hbm [shape: f32[1,8,128], index: 12, kind: output, shape index: {0}]
  %s13 = inlined_call_operand.hbm [shape: f32[2,8,32], index: 13, kind: output, shape index: {1}]
  %s14 = inlined_call_operand.hbm [shape: f32[2,8,32], index: 14, kind: output, shape index: {2}]
  %15 = xla_tuple %s12, %s13, %s14
  %s16 = sld [smem:[#allocation0]]
  $region90: #{decoder_forward.1} parent=0
    _
  %s18 = ssub.s32 1, %s16
  %s19 = scalar_select 0, %s18, %s16
  %s21 = sshll.u32 %s0, 4
  %s22 = int_to_ptr.vmem [resolvable:$true] %s21
  %24 = dma.vmem_to_smem %s22, 16, [#allocation5], [#allocation4]
  %26 = dma.done [#allocation4], 16
  %27 = sfence
  $region1: #{decoder_forward.1} parent=0
    #allocation6 [shape = 'u8[512]{0}', space=vmem, size = 0x400, scoped, tag = 'input window, operand 9, single buffered']
    #allocation7 [shape = 's32[1]{0}', space=sflag, size = 0x4, scoped, tag = 'scoped memory for decoder_forward.1']
    #allocation8 [shape = 's32[1]{0}', space=sflag, size = 0x4, scoped, tag = 'scoped memory for decoder_forward.1']
    #allocation9 [shape = 'u8[8192]{0}', space=vmem, size = 0x2000, scoped, tag = 'input window, operand 10, single buffered']
    #allocation10 [shape = 's32[1]{0}', space=sflag, size = 0x4, scoped, tag = 'scoped memory for decoder_forward.1']
    #allocation11 [shape = 'u8[8192]{0}', space=vmem, size = 0x2000, scoped, tag = 'input window, operand 11, single buffered']
    #allocation12 [shape = 'u8[4096]{0}', space=vmem, size = 0x1000, scoped, tag = 'output window, operand 0, single buffered']
    #allocation13 [shape = 'u8[8192]{0}', space=vmem, size = 0x2000, scoped, tag = 'output window, operand 1, single buffered']
    #allocation14 [shape = 's32[1]{0}', space=sflag, size = 0x4, scoped, tag = 'scoped memory for decoder_forward.1']
    #allocation15 [shape = 'u8[8192]{0}', space=vmem, size = 0x2000, scoped, tag = 'output window, operand 2, single buffered']
    %28 = vsyncpa [#allocation7], 0
    %29 = vsyncpa [#allocation10], 0
    %30 = vsyncpa [#allocation8], 0
    %31 = vsyncpa [#allocation14], 0
    // Predicated region
    $region2: #{decoder_forward.1} parent=1 // pred_check
      _
    $region3: #{decoder_forward.1} parent=1 // pred_check_branch
      %33 = sbr.rel (0) target = $region5
    $region4: #{decoder_forward.1} parent=1 // pred_region
      _
    $region5: #{decoder_forward.1} parent=1 // pred_fallthru
      _
    // Predicated region
    $region6: #{decoder_forward.1} parent=1 // pred_check
      _
    $region7: #{decoder_forward.1} parent=1 // pred_check_branch
      %35 = sbr.rel (0) target = $region9
    $region8: #{decoder_forward.1} parent=1 // pred_region
      _
    $region9: #{decoder_forward.1} parent=1 // pred_fallthru
      _
    // Predicated region
    $region10: #{decoder_forward.1} parent=1 // pred_check
      _
    $region11: #{decoder_forward.1} parent=1 // pred_check_branch
      %37 = sbr.rel (0) target = $region13
    $region12: #{decoder_forward.1} parent=1 // pred_region
      _
    $region13: #{decoder_forward.1} parent=1 // pred_fallthru
      _
    // Predicated region
    $region14: #{decoder_forward.1} parent=1 // pred_check
      _
    $region15: #{decoder_forward.1} parent=1 // pred_check_branch
      %39 = sbr.rel (0) target = $region17
    $region16: #{decoder_forward.1} parent=1 // pred_region
      _
    $region17: #{decoder_forward.1} parent=1 // pred_fallthru
      _
    // Predicated region
    $region18: #{decoder_forward.1} parent=1 // pred_check
      _
    $region19: #{decoder_forward.1} parent=1 // pred_check_branch
      %41 = sbr.rel (0) target = $region21
    $region20: #{decoder_forward.1} parent=1 // pred_region
      _
    $region21: #{decoder_forward.1} parent=1 // pred_fallthru
      _
    // Predicated region
    $region22: #{decoder_forward.1} parent=1 // pred_check
      _
    $region23: #{decoder_forward.1} parent=1 // pred_check_branch
      %43 = sbr.rel (0) target = $region25
    $region24: #{decoder_forward.1} parent=1 // pred_region
      _
    $region25: #{decoder_forward.1} parent=1 // pred_fallthru
      _
    // Predicated region
    $region26: #{decoder_forward.1} parent=1 // pred_check
      _
    $region27: #{decoder_forward.1} parent=1 // pred_check_branch
      %45 = sbr.rel (0) target = $region29
    $region28: #{decoder_forward.1} parent=1 // pred_region
      _
    $region29: #{decoder_forward.1} parent=1 // pred_fallthru
      _
    // Predicated region
    $region30: #{decoder_forward.1} parent=1 // pred_check
      _
    $region31: #{decoder_forward.1} parent=1 // pred_check_branch
      %47 = sbr.rel (0) target = $region33
    $region32: #{decoder_forward.1} parent=1 // pred_region
      _
    $region33: #{decoder_forward.1} parent=1 // pred_fallthru
      _
    // Predicated region
    $region34: #{decoder_forward.1} parent=1 // pred_check
      _
    $region35: #{decoder_forward.1} parent=1 // pred_check_branch
      %49 = sbr.rel (0) target = $region37
    $region36: #{decoder_forward.1} parent=1 // pred_region
      %51 = vsyncadd [#allocation7], 0
      %s53 = sshll.u32 %s9, 4
      %s54 = int_to_ptr.hbm [resolvable:$true] %s53
      %s55 = sshll.u32 [#allocation6], 4
      %s56 = int_to_ptr.vmem [resolvable:$true] %s55
      %58 = dma.hbm_to_vmem [thread:$0]  %s54, 16, %s56, [#allocation7]
    $region37: #{decoder_forward.1} parent=1 // pred_fallthru
      _
    // Predicated region
    $region38: #{decoder_forward.1} parent=1 // pred_check
      _
    $region39: #{decoder_forward.1} parent=1 // pred_check_branch
      %60 = sbr.rel (0) target = $region41
    $region40: #{decoder_forward.1} parent=1 // pred_region
      %62 = vsyncadd [#allocation10], 0
      %s63 = sshll.u32 %s10, 4
      %s64 = int_to_ptr.hbm [resolvable:$true] %s63
      %s65 = sshll.u32 [#allocation9], 4
      %s66 = int_to_ptr.vmem [resolvable:$true] %s65
      %71 = dma.hbm_to_vmem [thread:$0]  %s64, 256, %s66, [#allocation10], 128, 128, 8
    $region41: #{decoder_forward.1} parent=1 // pred_fallthru
      _
    // Predicated region
    $region42: #{decoder_forward.1} parent=1 // pred_check
      _
    $region43: #{decoder_forward.1} parent=1 // pred_check_branch
      %73 = sbr.rel (0) target = $region45
    $region44: #{decoder_forward.1} parent=1 // pred_region
      %75 = vsyncadd [#allocation10], 0
      %s76 = sshll.u32 %s11, 4
      %s77 = int_to_ptr.hbm [resolvable:$true] %s76
      %s78 = sshll.u32 [#allocation11], 4
      %s79 = int_to_ptr.vmem [resolvable:$true] %s78
      %84 = dma.hbm_to_vmem [thread:$0]  %s77, 256, %s79, [#allocation10], 128, 128, 8
    $region45: #{decoder_forward.1} parent=1 // pred_fallthru
      _
    // Predicated region
    $region46: #{decoder_forward.1} parent=1 // pred_check
      _
    $region47: #{decoder_forward.1} parent=1 // pred_check_branch
      %86 = sbr.rel (0) target = $region49
    $region48: #{decoder_forward.1} parent=1 // pred_region
      %88 = dma.done [#allocation7], 16
    $region49: #{decoder_forward.1} parent=1 // pred_fallthru
      _
    // Predicated region
    $region50: #{decoder_forward.1} parent=1 // pred_check
      _
    $region51: #{decoder_forward.1} parent=1 // pred_check_branch
      %90 = sbr.rel (0) target = $region53
    $region52: #{decoder_forward.1} parent=1 // pred_region
      %92 = dma.done [#allocation10], 256
    $region53: #{decoder_forward.1} parent=1 // pred_fallthru
      _
    // Predicated region
    $region54: #{decoder_forward.1} parent=1 // pred_check
      _
    $region55: #{decoder_forward.1} parent=1 // pred_check_branch
      %94 = sbr.rel (0) target = $region57
    $region56: #{decoder_forward.1} parent=1 // pred_region
      %96 = dma.done [#allocation10], 256
    $region57: #{decoder_forward.1} parent=1 // pred_fallthru
      _
    %p97 = scmp.eq.s32.totalorder 0, 0
    // Predicated region
    $region58: #{decoder_forward.1} parent=1 // pred_check
      %p98 = pneg %p97
    $region59: #{decoder_forward.1} parent=1 // pred_check_branch
      %100 = sbr.rel (%p98) target = $region61
    $region60: #{decoder_forward.1} parent=1 // pred_region
      %v101 = vld [vmem:[#allocation9] sm:$0xff]
      %v102 = vld [vmem:[#allocation9 + $0x8] sm:$0xff]
      %vm103 = vcmask 261120
      %104 = vst.msk [vmem:[#allocation2] sm:$0xff] %vm103, %v101
      %105 = vst.msk [vmem:[#allocation2 + $0x8] sm:$0xff] %vm103, %v102
      %v106 = vld [vmem:[#allocation11] sm:$0xff]
      %v107 = vld [vmem:[#allocation11 + $0x8] sm:$0xff]
      %108 = vst.msk [vmem:[#allocation3] sm:$0xff] %vm103, %v106
      %109 = vst.msk [vmem:[#allocation3 + $0x8] sm:$0xff] %vm103, %v107
    $region61: #{decoder_forward.1} parent=1 // pred_fallthru
      _
    %s110 = smul.u32 0, 8
    %s111 = sld [smem:[#allocation5 + %s110]]
    %s112 = scalar_lea.vmem %s1, %s111
    %v113 = vld [vmem:[%s112] sm:$0x1]
    %s114 = sadd.s32 %s110, 1
    %s115 = sld [smem:[#allocation5 + %s114]]
    %s116 = scalar_lea.vmem %s1, %s115
    %v117 = vld [vmem:[%s116] sm:$0x1]
    %s118 = sadd.s32 %s110, 2
    %s119 = sld [smem:[#allocation5 + %s118]]
    %s120 = scalar_lea.vmem %s1, %s119
    %v121 = vld [vmem:[%s120] sm:$0x1]
    %s122 = sadd.s32 %s110, 3
    %s123 = sld [smem:[#allocation5 + %s122]]
    %s124 = scalar_lea.vmem %s1, %s123
    %v125 = vld [vmem:[%s124] sm:$0x1]
    %s126 = sadd.s32 %s110, 4
    %s127 = sld [smem:[#allocation5 + %s126]]
    %s128 = scalar_lea.vmem %s1, %s127
    %v129 = vld [vmem:[%s128] sm:$0x1]
    %s130 = sadd.s32 %s110, 5
    %s131 = sld [smem:[#allocation5 + %s130]]
    %s132 = scalar_lea.vmem %s1, %s131
    %v133 = vld [vmem:[%s132] sm:$0x1]
    %s134 = sadd.s32 %s110, 6
    %s135 = sld [smem:[#allocation5 + %s134]]
    %s136 = scalar_lea.vmem %s1, %s135
    %v137 = vld [vmem:[%s136] sm:$0x1]
    %s138 = sadd.s32 %s110, 7
    %s139 = sld [smem:[#allocation5 + %s138]]
    %s140 = scalar_lea.vmem %s1, %s139
    %v141 = vld [vmem:[%s140] sm:$0x1]
    %v143 = vrot.slane %v117, 7
    %v146 = vrot.slane %v121, 6
    %v149 = vrot.slane %v125, 5
    %v152 = vrot.slane %v129, 4
    %v155 = vrot.slane %v133, 3
    %v158 = vrot.slane %v137, 2
    %v161 = vrot.slane %v141, 1
    %vm163 = vcmask 1040384
    %v164 = vsel %vm163, %v113, %v143
    %vm165 = vcmask 1041408
    %v166 = vsel %vm165, %v164, %v146
    %vm167 = vcmask 1042432
    %v168 = vsel %vm167, %v166, %v149
    %vm169 = vcmask 1043456
    %v170 = vsel %vm169, %v168, %v152
    %vm171 = vcmask 1044480
    %v172 = vsel %vm171, %v170, %v155
    %vm173 = vcmask 1045504
    %v174 = vsel %vm173, %v172, %v158
    %vm175 = vcmask 1046528
    %v176 = vsel %vm175, %v174, %v161
    %v177 = vld [vmem:[#allocation2] sm:$0xff]
    %v178 = vld [vmem:[#allocation3] sm:$0xff]
    %v179 = vld [vmem:[%s2] sm:$0xff]
    %v180 = vld [vmem:[%s2 + $0x8] sm:$0xff]
    %v181 = vld [vmem:[%s2 + $0x10] sm:$0xff]
    %v182 = vld [vmem:[%s2 + $0x18] sm:$0xff]
    %v183 = vld [vmem:[%s3] sm:$0xff]
    %v184 = vld [vmem:[%s3 + $0x8] sm:$0xff]
    %v185 = vld [vmem:[%s3 + $0x10] sm:$0xff]
    %v186 = vld [vmem:[%s3 + $0x18] sm:$0xff]
    %vm187 = vcmask 261120
    %v189 = vsel %vm187, %v177, 0
    %191 = vmatpush.msra.mxu0 0.0
    %192 = vmatpush.msra.mxu0 0.0
    %193 = vmatpush.msra.mxu0 0.0
    %194 = vmatpush.msra.mxu0 0.0
    %195 = vmatpush.msra.mxu0 0.0
    %196 = vmatpush.msra.mxu0 0.0
    %197 = vmatpush.msra.mxu0 0.0
    %198 = vmatpush.msra.mxu0 0.0
    %199 = vmatpush.msra.mxu0 0.0
    %200 = vmatpush.msra.mxu0 0.0
    %201 = vmatpush.msra.mxu0 0.0
    %202 = vmatpush.msra.mxu0 0.0
    %203 = vmatpush.msra.mxu0 %v186
    %204 = vmatpush.msra.mxu0 %v185
    %205 = vmatpush.msra.mxu0 %v184
    %206 = vmatpush.msra.mxu0 %v183
    %207 = vmatmul.f32.gmra.mxu0 %v189
    %v208 = vpop.f32.mrf.mxu0
    %v209 = vadd.f32 0.0, %v208
    %210 = vdwg.mxu0
    %v212 = vsel %vm187, %v176, 0
    %214 = vmatpush.msra.mxu0 0.0
    %215 = vmatpush.msra.mxu0 0.0
    %216 = vmatpush.msra.mxu0 0.0
    %217 = vmatpush.msra.mxu0 0.0
    %218 = vmatpush.msra.mxu0 0.0
    %219 = vmatpush.msra.mxu0 0.0
    %220 = vmatpush.msra.mxu0 0.0
    %221 = vmatpush.msra.mxu0 0.0
    %222 = vmatpush.msra.mxu0 0.0
    %223 = vmatpush.msra.mxu0 0.0
    %224 = vmatpush.msra.mxu0 0.0
    %225 = vmatpush.msra.mxu0 0.0
    %226 = vmatpush.msra.mxu0 %v182
    %227 = vmatpush.msra.mxu0 %v181
    %228 = vmatpush.msra.mxu0 %v180
    %229 = vmatpush.msra.mxu0 %v179
    %230 = vmatmul.f32.gmra.mxu0 %v212
    %v231 = vpop.f32.mrf.mxu0
    %v232 = vadd.f32 %v209, %v231
    %233 = vdwg.mxu0
    %v234 = vld [vmem:[%s4] sm:$0x1]
    %v236 = vperm.slane %v234, 0
    %v238 = vadd.f32 %v232, %v236
    %v239 = vxor.u32 %v238, 2147483648
    %v240 = vmul.f32 %v239, 1.442695
    %v241 = vpow.pop %v240
    %v242 = vadd.f32 %v241, 1.0
    %v243 = vrcp.pop %v242
    %v244 = vmul.f32 %v242, %v243
    %v245 = vsub.f32 1.0, %v244
    %v246 = vmul.f32 %v243, %v245
    %v247 = vadd.f32 %v243, %v246
    %vm248 = vweird.f32 %v242
    %vm249 = vweird.f32 %v243
    %vm250 = vmor %vm248, %vm249
    %v251 = vsel %vm250, %v243, %v247
    %v252 = vand.u32 2147483647, %v242
    %vm253 = vcmp.eq.f32.partialorder %v252, 8.507059e+37
    %v254 = vand.u32 %v242, 2147483648
    %v255 = vor.u32 1.1754944e-38, %v254
    %v256 = vsel %vm253, %v255, %v251
    %v257 = vmul.f32 1.0, %v256
    %v258 = vtanh.pop %v238
    %260 = vrot.lane.b32.xlu0 %v178, 32
    %v261 = vpop.permute.xlu0 %260
    %v263 = vmul.f32 %v257, %v261
    %265 = vrot.lane.b32.xlu0 %v258, 32
    %v266 = vpop.permute.xlu0 %265
    %v268 = vmul.f32 %v257, %v266
    %270 = vrot.lane.b32.xlu0 %v268, 32
    %v271 = vpop.permute.xlu0 %270
    %v273 = vadd.f32 %v263, %v271
    %v274 = vtanh.pop %v273
    %276 = vrot.lane.b32.xlu0 %v274, 32
    %v277 = vpop.permute.xlu0 %276
    %v279 = vmul.f32 %v257, %v277
    %281 = vrot.lane.b32.xlu0 %v279, 64
    %v282 = vpop.permute.xlu0 %281
    %284 = vst.msk [vmem:[#allocation2] sm:$0xff] %vm187, %v282
    %286 = vrot.lane.b32.xlu0 %v273, 96
    %v287 = vpop.permute.xlu0 %286
    %289 = vst.msk [vmem:[#allocation3] sm:$0xff] %vm187, %v287
    %s290 = scalar_lea.vmem [#allocation2], 8
    %v291 = vld [vmem:[%s290] sm:$0xff]
    %s292 = scalar_lea.vmem [#allocation3], 8
    %v293 = vld [vmem:[%s292] sm:$0xff]
    %v294 = vld [vmem:[%s5] sm:$0xff]
    %v295 = vld [vmem:[%s5 + $0x8] sm:$0xff]
    %v296 = vld [vmem:[%s5 + $0x10] sm:$0xff]
    %v297 = vld [vmem:[%s5 + $0x18] sm:$0xff]
    %v298 = vld [vmem:[%s6] sm:$0xff]
    %v299 = vld [vmem:[%s6 + $0x8] sm:$0xff]
    %v300 = vld [vmem:[%s6 + $0x10] sm:$0xff]
    %v301 = vld [vmem:[%s6 + $0x18] sm:$0xff]
    %v303 = vsel %vm187, %v291, 0
    %305 = vmatpush.msra.mxu0 0.0
    %306 = vmatpush.msra.mxu0 0.0
    %307 = vmatpush.msra.mxu0 0.0
    %308 = vmatpush.msra.mxu0 0.0
    %309 = vmatpush.msra.mxu0 0.0
    %310 = vmatpush.msra.mxu0 0.0
    %311 = vmatpush.msra.mxu0 0.0
    %312 = vmatpush.msra.mxu0 0.0
    %313 = vmatpush.msra.mxu0 0.0
    %314 = vmatpush.msra.mxu0 0.0
    %315 = vmatpush.msra.mxu0 0.0
    %316 = vmatpush.msra.mxu0 0.0
    %317 = vmatpush.msra.mxu0 %v301
    %318 = vmatpush.msra.mxu0 %v300
    %319 = vmatpush.msra.mxu0 %v299
    %320 = vmatpush.msra.mxu0 %v298
    %321 = vmatmul.f32.gmra.mxu0 %v303
    %v322 = vpop.f32.mrf.mxu0
    %v323 = vadd.f32 0.0, %v322
    %324 = vdwg.mxu0
    %v325 = vsel %vm187, %v282, 0
    %327 = vmatpush.msra.mxu0 0.0
    %328 = vmatpush.msra.mxu0 0.0
    %329 = vmatpush.msra.mxu0 0.0
    %330 = vmatpush.msra.mxu0 0.0
    %331 = vmatpush.msra.mxu0 0.0
    %332 = vmatpush.msra.mxu0 0.0
    %333 = vmatpush.msra.mxu0 0.0
    %334 = vmatpush.msra.mxu0 0.0
    %335 = vmatpush.msra.mxu0 0.0
    %336 = vmatpush.msra.mxu0 0.0
    %337 = vmatpush.msra.mxu0 0.0
    %338 = vmatpush.msra.mxu0 0.0
    %339 = vmatpush.msra.mxu0 %v297
    %340 = vmatpush.msra.mxu0 %v296
    %341 = vmatpush.msra.mxu0 %v295
    %342 = vmatpush.msra.mxu0 %v294
    %343 = vmatmul.f32.gmra.mxu0 %v325
    %v344 = vpop.f32.mrf.mxu0
    %v345 = vadd.f32 %v323, %v344
    %346 = vdwg.mxu0
    %v347 = vld [vmem:[%s7] sm:$0x1]
    %v349 = vperm.slane %v347, 0
    %v351 = vadd.f32 %v345, %v349
    %v352 = vxor.u32 %v351, 2147483648
    %v353 = vmul.f32 %v352, 1.442695
    %v354 = vpow.pop %v353
    %v355 = vadd.f32 %v354, 1.0
    %v356 = vrcp.pop %v355
    %v357 = vmul.f32 %v355, %v356
    %v358 = vsub.f32 1.0, %v357
    %v359 = vmul.f32 %v356, %v358
    %v360 = vadd.f32 %v356, %v359
    %vm361 = vweird.f32 %v355
    %vm362 = vweird.f32 %v356
    %vm363 = vmor %vm361, %vm362
    %v364 = vsel %vm363, %v356, %v360
    %v365 = vand.u32 2147483647, %v355
    %vm366 = vcmp.eq.f32.partialorder %v365, 8.507059e+37
    %v367 = vand.u32 %v355, 2147483648
    %v368 = vor.u32 1.1754944e-38, %v367
    %v369 = vsel %vm366, %v368, %v364
    %v370 = vmul.f32 1.0, %v369
    %v371 = vtanh.pop %v351
    %373 = vrot.lane.b32.xlu0 %v293, 32
    %v374 = vpop.permute.xlu0 %373
    %v376 = vmul.f32 %v370, %v374
    %378 = vrot.lane.b32.xlu0 %v371, 32
    %v379 = vpop.permute.xlu0 %378
    %v381 = vmul.f32 %v370, %v379
    %383 = vrot.lane.b32.xlu0 %v381, 32
    %v384 = vpop.permute.xlu0 %383
    %v386 = vadd.f32 %v376, %v384
    %v387 = vtanh.pop %v386
    %389 = vrot.lane.b32.xlu0 %v387, 32
    %v390 = vpop.permute.xlu0 %389
    %v392 = vmul.f32 %v370, %v390
    %394 = vrot.lane.b32.xlu0 %v392, 64
    %v395 = vpop.permute.xlu0 %394
    %397 = vst.msk [vmem:[%s290] sm:$0xff] %vm187, %v395
    %399 = vrot.lane.b32.xlu0 %v386, 96
    %v400 = vpop.permute.xlu0 %399
    %402 = vst.msk [vmem:[%s292] sm:$0xff] %vm187, %v400
    %v403 = vld [vmem:[%s8] sm:$0xff]
    %v404 = vld [vmem:[%s8 + $0x8] sm:$0xff]
    %v405 = vld [vmem:[%s8 + $0x10] sm:$0xff]
    %v406 = vld [vmem:[%s8 + $0x18] sm:$0xff]
    %v407 = vld [vmem:[#allocation6] sm:$0x1]
    %v409 = vperm.slane %v407, 0
    %v411 = vsel %vm187, %v395, 0
    %413 = vmatpush.msra.mxu0 0.0
    %414 = vmatpush.msra.mxu0 0.0
    %415 = vmatpush.msra.mxu0 0.0
    %416 = vmatpush.msra.mxu0 0.0
    %417 = vmatpush.msra.mxu0 0.0
    %418 = vmatpush.msra.mxu0 0.0
    %419 = vmatpush.msra.mxu0 0.0
    %420 = vmatpush.msra.mxu0 0.0
    %421 = vmatpush.msra.mxu0 0.0
    %422 = vmatpush.msra.mxu0 0.0
    %423 = vmatpush.msra.mxu0 0.0
    %424 = vmatpush.msra.mxu0 0.0
    %425 = vmatpush.msra.mxu0 %v406
    %426 = vmatpush.msra.mxu0 %v405
    %427 = vmatpush.msra.mxu0 %v404
    %428 = vmatpush.msra.mxu0 %v403
    %429 = vmatmul.f32.gmra.mxu0 %v411
    %v430 = vpop.f32.mrf.mxu0
    %v431 = vadd.f32 %v409, %v430
    %432 = vdwg.mxu0
    %433 = vst [vmem:[#allocation12] sm:$0xff] %v431
    // Predicated region
    $region62: #{decoder_forward.1} parent=1 // pred_check
      %p434 = pneg %p97
    $region63: #{decoder_forward.1} parent=1 // pred_check_branch
      %436 = sbr.rel (%p434) target = $region65
    $region64: #{decoder_forward.1} parent=1 // pred_region
      %v437 = vld [vmem:[#allocation2] sm:$0xff]
      %v438 = vld [vmem:[#allocation2 + $0x8] sm:$0xff]
      %439 = vst.msk [vmem:[#allocation13] sm:$0xff] %vm187, %v437
      %440 = vst.msk [vmem:[#allocation13 + $0x8] sm:$0xff] %vm187, %v438
      %v441 = vld [vmem:[#allocation3] sm:$0xff]
      %v442 = vld [vmem:[#allocation3 + $0x8] sm:$0xff]
      %443 = vst.msk [vmem:[#allocation15] sm:$0xff] %vm187, %v441
      %444 = vst.msk [vmem:[#allocation15 + $0x8] sm:$0xff] %vm187, %v442
    $region65: #{decoder_forward.1} parent=1 // pred_fallthru
      _
    // Predicated region
    $region66: #{decoder_forward.1} parent=1 // pred_check
      _
    $region67: #{decoder_forward.1} parent=1 // pred_check_branch
      %446 = sbr.rel (0) target = $region69
    $region68: #{decoder_forward.1} parent=1 // pred_region
      %448 = vsyncadd [#allocation8], 0
      %s450 = sshll.u32 [#allocation12], 4
      %s451 = int_to_ptr.vmem [resolvable:$true] %s450
      %s452 = sshll.u32 %s12, 4
      %s453 = int_to_ptr.hbm [resolvable:$true] %s452
      %455 = dma.vmem_to_hbm [thread:$0]  %s451, 128, %s453, [#allocation8]
    $region69: #{decoder_forward.1} parent=1 // pred_fallthru
      _
    // Predicated region
    $region70: #{decoder_forward.1} parent=1 // pred_check
      _
    $region71: #{decoder_forward.1} parent=1 // pred_check_branch
      %457 = sbr.rel (0) target = $region73
    $region72: #{decoder_forward.1} parent=1 // pred_region
      %459 = vsyncadd [#allocation14], 0
      %s460 = sshll.u32 [#allocation13], 4
      %s461 = int_to_ptr.vmem [resolvable:$true] %s460
      %s462 = sshll.u32 %s13, 4
      %s463 = int_to_ptr.hbm [resolvable:$true] %s462
      %468 = dma.vmem_to_hbm [thread:$0]  %s461, 256, %s463, [#allocation14], 128, 128, 8
    $region73: #{decoder_forward.1} parent=1 // pred_fallthru
      _
    // Predicated region
    $region74: #{decoder_forward.1} parent=1 // pred_check
      _
    $region75: #{decoder_forward.1} parent=1 // pred_check_branch
      %470 = sbr.rel (0) target = $region77
    $region76: #{decoder_forward.1} parent=1 // pred_region
      %472 = vsyncadd [#allocation14], 0
      %s473 = sshll.u32 [#allocation15], 4
      %s474 = int_to_ptr.vmem [resolvable:$true] %s473
      %s475 = sshll.u32 %s14, 4
      %s476 = int_to_ptr.hbm [resolvable:$true] %s475
      %481 = dma.vmem_to_hbm [thread:$0]  %s474, 256, %s476, [#allocation14], 128, 128, 8
    $region77: #{decoder_forward.1} parent=1 // pred_fallthru
      _
    // Predicated region
    $region78: #{decoder_forward.1} parent=1 // pred_check
      _
    $region79: #{decoder_forward.1} parent=1 // pred_check_branch
      %483 = sbr.rel (0) target = $region81
    $region80: #{decoder_forward.1} parent=1 // pred_region
      %485 = dma.done [#allocation8], 128
    $region81: #{decoder_forward.1} parent=1 // pred_fallthru
      _
    // Predicated region
    $region82: #{decoder_forward.1} parent=1 // pred_check
      _
    $region83: #{decoder_forward.1} parent=1 // pred_check_branch
      %487 = sbr.rel (0) target = $region85
    $region84: #{decoder_forward.1} parent=1 // pred_region
      %489 = dma.done [#allocation14], 256
    $region85: #{decoder_forward.1} parent=1 // pred_fallthru
      _
    // Predicated region
    $region86: #{decoder_forward.1} parent=1 // pred_check
      _
    $region87: #{decoder_forward.1} parent=1 // pred_check_branch
      %491 = sbr.rel (0) target = $region89
    $region88: #{decoder_forward.1} parent=1 // pred_region
      %493 = dma.done [#allocation14], 256
    $region89: #{decoder_forward.1} parent=1 // pred_fallthru
      _
    %494 = vsyncpa [#allocation7], 1
    %495 = vsyncpa [#allocation10], 1
    %496 = vsyncpa [#allocation8], 1
    %497 = vsyncpa [#allocation14], 1

</llo_original>
